<compile_context>
chip_gen: v6e
topology: v6e:2x2x1
jax: 0.10.0
libtpu: 0.0.40
codegen_flags: <defaults>
</compile_context>

<pallas_src>
import jax
import jax.numpy as jnp
from jax import lax
from jax.experimental import pallas as pl
from jax.experimental.pallas import tpu as pltpu

MATMUL_DTYPE = jnp.bfloat16          # MXU operand dtype (f32 accumulation)
VMEM_LIMIT_BYTES = 48 * 1024 * 1024  # < 64 MiB so it is valid on v7x too


# --------------------------------------------------------------------------
# Kernels
# --------------------------------------------------------------------------
def _proj_kernel(x_ref, w_ref, h_ref):
    """h = x @ W (one GATConv linear projection), row tile.  bf16 output."""
    h_ref[...] = jnp.dot(
        x_ref[...].astype(MATMUL_DTYPE),
        w_ref[...].astype(MATMUL_DTYPE),
        preferred_element_type=jnp.float32,
    ).astype(h_ref.dtype)


def _gat_agg_kernel(adj_ref, hd_ref, hs_ref, asrc_ref, adst_ref, bias_ref,
                    o_ref, ed_sc, m_sc, l_sc, acc_sc):
    """Online masked-softmax aggregation over source tiles + normalize + ReLU.

    grid = (dst_tiles, src_tiles); src axis is last ("arbitrary").
    """
    k = pl.program_id(1)

    @pl.when(k == 0)
    def _():
        m_sc[...] = jnp.full(m_sc.shape, -1e30, dtype=jnp.float32)
        l_sc[...] = jnp.zeros(l_sc.shape, dtype=jnp.float32)
        acc_sc[...] = jnp.zeros(acc_sc.shape, dtype=jnp.float32)
        # e_dst[i] = <h_dst[i], a_dst>; computed once per dst tile (MXU).
        ed_sc[...] = lax.dot_general(
            hd_ref[...], adst_ref[...].astype(MATMUL_DTYPE),
            dimension_numbers=(((1,), (1,)), ((), ())),
            preferred_element_type=jnp.float32)                  # [TM, 1]

    h_src = hs_ref[...]                                  # [TK, H] bf16
    mask = adj_ref[...].astype(jnp.float32)              # [TM, TK] 0/1

    # e_src[j] = <h_src[j], a_src>, produced directly as a [1, TK] row (MXU).
    e_src = lax.dot_general(asrc_ref[...].astype(MATMUL_DTYPE), h_src,
                            dimension_numbers=(((1,), (1,)), ((), ())),
                            preferred_element_type=jnp.float32)  # [1, TK]

    s = ed_sc[...] + e_src                               # [TM, TK]
    s = jnp.where(s > 0, s, 0.2 * s)                     # LeakyReLU(0.2)
    s = s + (mask - 1.0) * 1e30                          # additive mask

    m_prev = m_sc[...]
    m_new = jnp.maximum(m_prev, jnp.max(s, axis=-1, keepdims=True))
    corr = jnp.exp(m_prev - m_new)
    p = jnp.exp(s - m_new) * mask                        # robust to empty rows

    l_sc[...] = corr * l_sc[...] + jnp.sum(p, axis=-1, keepdims=True)
    acc_sc[...] = corr * acc_sc[...] + jnp.dot(
        p.astype(MATMUL_DTYPE), h_src, preferred_element_type=jnp.float32)
    m_sc[...] = m_new

    @pl.when(k == pl.num_programs(1) - 1)
    def _():
        inv_l = pl.reciprocal(jnp.maximum(l_sc[...], 1e-20), approx=True)
        out = acc_sc[...] * inv_l + bias_ref[...]        # softmax-avg + bias
        # F.normalize(p=2, dim=1): x * rsqrt(max(sum(x^2), eps^2))
        sumsq = jnp.sum(out * out, axis=-1, keepdims=True)
        out = out * lax.rsqrt(jnp.maximum(sumsq, 1e-24))
        o_ref[...] = jnp.maximum(out, 0.0).astype(o_ref.dtype)


def _final_lin_kernel(o1_ref, o2_ref, o3_ref, w1_ref, w2_ref, w3_ref, b_ref,
                      y_ref):
    """y = concat(o1,o2,o3) @ Wl + b, with Wl pre-split (no in-kernel concat)."""
    md = MATMUL_DTYPE
    y = jnp.dot(o1_ref[...].astype(md), w1_ref[...].astype(md),
                preferred_element_type=jnp.float32)
    y = y + jnp.dot(o2_ref[...].astype(md), w2_ref[...].astype(md),
                    preferred_element_type=jnp.float32)
    y = y + jnp.dot(o3_ref[...].astype(md), w3_ref[...].astype(md),
                    preferred_element_type=jnp.float32)
    y_ref[...] = (y + b_ref[...]).astype(y_ref.dtype)


# --------------------------------------------------------------------------
# Wrappers
# --------------------------------------------------------------------------
def _choose_row_tile(n, preferred=256):
    """Destination-row tile: multiple of 8 (sublanes) dividing n, or n."""
    if n <= preferred:
        return n
    t = (preferred // 8) * 8
    while t >= 8:
        if n % t == 0:
            return t
        t -= 8
    return n


def _choose_src_tile(n, preferred=1024):
    """Source tile (lane axis of adj): multiple of 128 dividing n, or n."""
    if n <= preferred:
        return n
    t = (preferred // 128) * 128
    while t >= 128:
        if n % t == 0:
            return t
        t -= 128
    return n


def _pad_lanes(a, target):
    """Zero-pad the last dim of a 2-D array up to `target` columns."""
    return jnp.pad(a, ((0, 0), (0, target - a.shape[1])))


def _projection(x, w, tm):
    n, f = x.shape
    hp = w.shape[1]
    return pl.pallas_call(
        _proj_kernel,
        out_shape=jax.ShapeDtypeStruct((n, hp), MATMUL_DTYPE),
        grid_spec=pltpu.PrefetchScalarGridSpec(
            num_scalar_prefetch=0,
            grid=(n // tm,),
            in_specs=[pl.BlockSpec((tm, f), lambda i: (i, 0)),
                      pl.BlockSpec((f, hp), lambda i: (0, 0))],
            out_specs=pl.BlockSpec((tm, hp), lambda i: (i, 0))),
        compiler_params=pltpu.CompilerParams(
            dimension_semantics=("parallel",),
            vmem_limit_bytes=VMEM_LIMIT_BYTES),
        cost_estimate=pl.CostEstimate(
            flops=2 * n * f * hp, transcendentals=0,
            bytes_accessed=4 * (n * f + f * hp) + 2 * n * hp),
    )(x, w)


def _aggregation(adj, h_all, a_src, a_dst, bias, tm, tk):
    n, hp = h_all.shape
    return pl.pallas_call(
        _gat_agg_kernel,
        out_shape=jax.ShapeDtypeStruct((n, hp), jnp.float32),
        grid_spec=pltpu.PrefetchScalarGridSpec(
            num_scalar_prefetch=0,
            grid=(n // tm, n // tk),
            in_specs=[
                pl.BlockSpec((tm, tk), lambda i, k: (i, k)),   # adj (int8)
                pl.BlockSpec((tm, hp), lambda i, k: (i, 0)),   # h, dst rows
                pl.BlockSpec((tk, hp), lambda i, k: (k, 0)),   # h, src rows
                pl.BlockSpec((1, hp), lambda i, k: (0, 0)),    # a_src
                pl.BlockSpec((1, hp), lambda i, k: (0, 0)),    # a_dst
                pl.BlockSpec((1, hp), lambda i, k: (0, 0)),    # bias
            ],
            out_specs=pl.BlockSpec((tm, hp), lambda i, k: (i, 0)),
            scratch_shapes=[pltpu.VMEM((tm, 1), jnp.float32),    # e_dst
                            pltpu.VMEM((tm, 1), jnp.float32),    # m
                            pltpu.VMEM((tm, 1), jnp.float32),    # l
                            pltpu.VMEM((tm, hp), jnp.float32)]), # acc
        compiler_params=pltpu.CompilerParams(
            dimension_semantics=("parallel", "arbitrary"),
            vmem_limit_bytes=VMEM_LIMIT_BYTES),
        cost_estimate=pl.CostEstimate(
            flops=2 * n * n * hp + 12 * n * n,
            transcendentals=2 * n * n,
            bytes_accessed=n * n + 2 * 3 * n * hp + 4 * n * hp),
    )(adj, h_all, h_all, a_src, a_dst, bias)


def node_gat_forward(x, adj, params):
    """x: [N, F] f32; adj: [N, N] int8 (adj[dst, src], self-loops included)."""
    n = x.shape[0]
    h = params["w1"].shape[1]
    c = params["lin_w1"].shape[1]
    tm = _choose_row_tile(n)
    tk = _choose_src_tile(n)
    assert n % tm == 0 and n % tk == 0

    # Lane-dense hidden dim: pad H (and inputs of layers 2/3) to 128 lanes.
    h_pad = max(128, ((h + 127) // 128) * 128)
    w1 = _pad_lanes(params["w1"], h_pad)                           # [F,  Hp]
    w2 = _pad_lanes(jnp.pad(params["w2"], ((0, h_pad - h), (0, 0))), h_pad)
    w3 = _pad_lanes(jnp.pad(params["w3"], ((0, h_pad - h), (0, 0))), h_pad)
    ws = {1: w1, 2: w2, 3: w3}
    avecs = {i: (_pad_lanes(params[f"a_src{i}"], h_pad),
                 _pad_lanes(params[f"a_dst{i}"], h_pad),
                 _pad_lanes(params[f"b{i}"], h_pad)) for i in (1, 2, 3)}

    def layer(inp, idx):
        proj = _projection(inp, ws[idx], tm)
        a_s, a_d, b = avecs[idx]
        return _aggregation(adj, proj, a_s, a_d, b, tm, tk)

    o1 = layer(x, 1)
    o2 = layer(o1, 2)
    o3 = layer(o2, 3)

    # Lane-dense final output: pad class dim to a multiple of 128.
    c_pad = max(128, ((c + 127) // 128) * 128)
    pad_w = lambda w: jnp.pad(w, ((0, h_pad - h), (0, c_pad - c)))
    wl1, wl2, wl3 = (pad_w(params[k]) for k in ("lin_w1", "lin_w2", "lin_w3"))
    bl = jnp.pad(params["lin_b"], ((0, 0), (0, c_pad - c)))

    y = pl.pallas_call(
        _final_lin_kernel,
        out_shape=jax.ShapeDtypeStruct((n, c_pad), jnp.float32),
        grid_spec=pltpu.PrefetchScalarGridSpec(
            num_scalar_prefetch=0,
            grid=(n // tm,),
            in_specs=[pl.BlockSpec((tm, h_pad), lambda i: (i, 0)),
                      pl.BlockSpec((tm, h_pad), lambda i: (i, 0)),
                      pl.BlockSpec((tm, h_pad), lambda i: (i, 0)),
                      pl.BlockSpec((h_pad, c_pad), lambda i: (0, 0)),
                      pl.BlockSpec((h_pad, c_pad), lambda i: (0, 0)),
                      pl.BlockSpec((h_pad, c_pad), lambda i: (0, 0)),
                      pl.BlockSpec((1, c_pad), lambda i: (0, 0))],
            out_specs=pl.BlockSpec((tm, c_pad), lambda i: (i, 0))),
        compiler_params=pltpu.CompilerParams(
            dimension_semantics=("parallel",),
            vmem_limit_bytes=VMEM_LIMIT_BYTES),
        cost_estimate=pl.CostEstimate(
            flops=3 * 2 * n * h_pad * c_pad, transcendentals=0,
            bytes_accessed=4 * (3 * n * h_pad + 3 * h_pad * c_pad + n * c_pad)),
    )(o1, o2, o3, wl1, wl2, wl3, bl)
    return y[:, :c]


# --------------------------------------------------------------------------
# Parameters / graph helpers
# --------------------------------------------------------------------------
def make_params(key, num_features, hidden, num_classes):
    ks = jax.random.split(key, 16)
    scale = 0.2
    p = {}
    dims_in = (num_features, hidden, hidden)
    for li in range(3):
        i = li + 1
        p[f"w{i}"] = scale * jax.random.normal(ks[4 * li + 0],
                                               (dims_in[li], hidden), jnp.float32)
        p[f"a_src{i}"] = scale * jax.random.normal(ks[4 * li + 1], (1, hidden),
                                                   jnp.float32)
        p[f"a_dst{i}"] = scale * jax.random.normal(ks[4 * li + 2], (1, hidden),
                                                   jnp.float32)
        p[f"b{i}"] = scale * jax.random.normal(ks[4 * li + 3], (1, hidden),
                                               jnp.float32)
    # Final Linear(3H -> C), pre-split along the concat axis.
    p["lin_w1"] = scale * jax.random.normal(ks[12], (hidden, num_classes), jnp.float32)
    p["lin_w2"] = scale * jax.random.normal(ks[13], (hidden, num_classes), jnp.float32)
    p["lin_w3"] = scale * jax.random.normal(ks[14], (hidden, num_classes), jnp.float32)
    p["lin_b"] = scale * jax.random.normal(ks[15], (1, num_classes), jnp.float32)
    return p


def edge_index_to_dense_adj(edge_index, num_nodes):
    """edge_index: [2, E] (row 0 = src, row 1 = dst). int8 mask + self-loops."""
    adj = jnp.zeros((num_nodes, num_nodes), jnp.int8)
    src, dst = edge_index[0], edge_index[1]
    adj = adj.at[dst, src].set(1)                       # adj[dst, src]
    diag = jnp.arange(num_nodes)
    adj = adj.at[diag, diag].set(1)                     # self-loops (PyG default)
    return adj


if __name__ == "__main__":
    N, F, H, C = 16, 16, 32, 8          # nodes, features, hidden, classes

    key = jax.random.PRNGKey(0)
    k_x, k_p = jax.random.split(key)

    x = jax.random.normal(k_x, (N, F), jnp.float32)

    # Deterministic small graph: bidirectional ring over N nodes.
    idx = jnp.arange(N)
    src = jnp.concatenate([idx, (idx + 1) % N])
    dst = jnp.concatenate([(idx + 1) % N, idx])
    edge_index = jnp.stack([src, dst], axis=0)          # [2, 2N]
    adj = edge_index_to_dense_adj(edge_index, N)        # [N, N] int8, dst x src

    params = make_params(k_p, F, H, C)

    out = node_gat_forward(x, adj, params)
    out = jax.block_until_ready(out)
    assert out.shape == (N, C) and out.dtype == jnp.float32
    assert bool(jnp.all(jnp.isfinite(out)))
    print("KERNEL_OK")
</pallas_src>

<mosaic_0001>
module attributes {stable_mosaic.version = 11 : i64} {
  func.func @_proj_kernel(%arg0: i32, %arg1: memref<16x16xf32, #tpu.memory_space<vmem>>, %arg2: memref<16x128xf32, #tpu.memory_space<vmem>>, %arg3: memref<16x128xbf16, #tpu.memory_space<vmem>>) attributes {dimension_semantics = [#tpu.dimension_semantics<parallel>], iteration_bounds = array<i64: 1>, scalar_prefetch = 0 : i64, scratch_operands = 0 : i64, tpu.core_type = #tpu.core_type<tc>, window_params = [{transform_indices = @transform_0, window_bounds = array<i64: 16, 16>}, {pipeline_mode = #tpu.pipeline_mode<synchronous>, transform_indices = @transform_1, window_bounds = array<i64: 16, 128>}, {transform_indices = @transform_2, window_bounds = array<i64: 16, 128>}]} {
    %c0 = arith.constant 0 : index
    %c0_0 = arith.constant 0 : index
    %0 = vector.load %arg1[%c0, %c0_0] : memref<16x16xf32, #tpu.memory_space<vmem>>, vector<16x16xf32>
    %1 = arith.truncf %0 : vector<16x16xf32> to vector<16x16xbf16>
    %c0_1 = arith.constant 0 : index
    %c0_2 = arith.constant 0 : index
    %2 = vector.load %arg2[%c0_1, %c0_2] : memref<16x128xf32, #tpu.memory_space<vmem>>, vector<16x128xf32>
    %3 = arith.truncf %2 : vector<16x128xf32> to vector<16x128xbf16>
    %cst = arith.constant dense<0.000000e+00> : vector<16x128xf32>
    %4 = tpu.matmul %1, %3, %cst {dimension_numbers = #tpu.dot_dimension_numbers<[1], [0], [0], [1], [0, 0, 1, 1], [], []>} : vector<16x16xbf16>, vector<16x128xbf16>, vector<16x128xf32> -> vector<16x128xf32>
    %5 = arith.truncf %4 : vector<16x128xf32> to vector<16x128xbf16>
    %c0_3 = arith.constant 0 : index
    %c0_4 = arith.constant 0 : index
    %6 = vector.load %arg3[%c0_3, %c0_4] : memref<16x128xbf16, #tpu.memory_space<vmem>>, vector<16x128xbf16>
    tpu.vector_store %arg3[%c0_3, %c0_4], %5 {strides = array<i32>} : memref<16x128xbf16, #tpu.memory_space<vmem>>, vector<16x128xbf16>,
    return
  }
  func.func @transform_0(%arg0: i32) -> (i32, i32) {
    %c0_i32 = arith.constant 0 : i32
    %c0_i32_0 = arith.constant 0 : i32
    return %arg0, %c0_i32 : i32, i32
  }
  func.func @transform_1(%arg0: i32) -> (i32, i32) {
    %c0_i32 = arith.constant 0 : i32
    %c0_i32_0 = arith.constant 0 : i32
    %c0_i32_1 = arith.constant 0 : i32
    return %c0_i32, %c0_i32_0 : i32, i32
  }
  func.func @transform_2(%arg0: i32) -> (i32, i32) {
    %c0_i32 = arith.constant 0 : i32
    %c0_i32_0 = arith.constant 0 : i32
    return %arg0, %c0_i32 : i32, i32
  }
}

</mosaic_0001>

<llo_original>
// kernel: tpu_custom_call.1
$region0: #{tpu_custom_call.1}
  #allocation0 [shape = 'u32[]', space=smem, size = 0x4, offset = 0x4, fixed_abs, tag = 'smem constant byte address 0x4 - core index']
  #allocation1 [shape = 'u32[144,128]{1,0:T(1,128)}', space=vmem, size = 0x12000, scoped, tag = 'internal scratch']
  %s0 = inlined_call_operand.hbm [shape: f32[16,16], index: 0, kind: input, shape index: {}]
  %s1 = inlined_call_operand.hbm [shape: f32[16,128], index: 1, kind: input, shape index: {}]
  %s2 = inlined_call_operand.hbm [shape: bf16[16,128], index: 2, kind: output, shape index: {}]
  %s3 = sld [smem:[#allocation0]]
  $region26: #{tpu_custom_call.1} parent=0
    _
  %s5 = ssub.s32 1, %s3
  %s6 = scalar_select 0, %s5, %s3
  $region1: #{tpu_custom_call.1} parent=0
    #allocation2 [shape = 'u8[8192]{0}', space=vmem, size = 0x2000, scoped, tag = 'input window, operand 0, single buffered']
    #allocation3 [shape = 's32[1]{0}', space=sflag, size = 0x4, scoped, tag = 'scoped memory for tpu_custom_call.1']
    #allocation4 [shape = 's32[1]{0}', space=sflag, size = 0x4, scoped, tag = 'scoped memory for tpu_custom_call.1']
    #allocation5 [shape = 'u8[8192]{0}', space=vmem, size = 0x2000, scoped, tag = 'input window, operand 1, single buffered']
    #allocation6 [shape = 's32[1]{0}', space=sflag, size = 0x4, scoped, tag = 'scoped memory for tpu_custom_call.1']
    #allocation7 [shape = 'u8[4096]{0}', space=vmem, size = 0x1000, scoped, tag = 'output window, operand 0, single buffered']
    %7 = vsyncpa [#allocation3], 0
    %8 = vsyncpa [#allocation6], 0
    %9 = vsyncpa [#allocation4], 0
    // Predicated region
    $region2: #{tpu_custom_call.1} parent=1 // pred_check
      _
    $region3: #{tpu_custom_call.1} parent=1 // pred_check_branch
      %11 = sbr.rel (0) target = $region5
    $region4: #{tpu_custom_call.1} parent=1 // pred_region
      %s13 = ssub.s32 256, 256
      %14 = vsyncadd [#allocation3], %s13
      %s15 = sshll.u32 [#allocation2], 4
      %s16 = int_to_ptr.vmem [resolvable:$true] %s15
      %21 = dma.hbm_to_vmem [thread:$0]  %s0, 256, %s16, [#allocation3], 128, 128, 8
    $region5: #{tpu_custom_call.1} parent=1 // pred_fallthru
      _
    // Predicated region
    $region6: #{tpu_custom_call.1} parent=1 // pred_check
      _
    $region7: #{tpu_custom_call.1} parent=1 // pred_check_branch
      %23 = sbr.rel (0) target = $region9
    $region8: #{tpu_custom_call.1} parent=1 // pred_region
      %s25 = ssub.s32 256, 256
      %26 = vsyncadd [#allocation6], %s25
      %s27 = sshll.u32 [#allocation5], 4
      %s28 = int_to_ptr.vmem [resolvable:$true] %s27
      %33 = dma.hbm_to_vmem [thread:$0]  %s1, 256, %s28, [#allocation6], 128, 128, 8
    $region9: #{tpu_custom_call.1} parent=1 // pred_fallthru
      _
    // Predicated region
    $region10: #{tpu_custom_call.1} parent=1 // pred_check
      _
    $region11: #{tpu_custom_call.1} parent=1 // pred_check_branch
      %35 = sbr.rel (0) target = $region13
    $region12: #{tpu_custom_call.1} parent=1 // pred_region
      %36 = dma.done [#allocation3], 256
    $region13: #{tpu_custom_call.1} parent=1 // pred_fallthru
      _
    // Predicated region
    $region14: #{tpu_custom_call.1} parent=1 // pred_check
      _
    $region15: #{tpu_custom_call.1} parent=1 // pred_check_branch
      %38 = sbr.rel (0) target = $region17
    $region16: #{tpu_custom_call.1} parent=1 // pred_region
      %39 = dma.done [#allocation6], 256
    $region17: #{tpu_custom_call.1} parent=1 // pred_fallthru
      _
    %v41 = vld [vmem:[#allocation2] sm:$0xff]
    %v42 = vld [vmem:[#allocation2 + $0x8] sm:$0xff]
    %v43 = vpack.c.bf16 %v42, %v41
    %v44 = vld [vmem:[#allocation5] sm:$0xff]
    %v45 = vld [vmem:[#allocation5 + $0x8] sm:$0xff]
    %v46 = vpack.c.bf16 %v45, %v44
    %vm47 = vcmask 130048
    %v49 = vsel %vm47, %v43, 0
    %51 = vmatprep.subr.bf16.mxu0 0
    %52 = vmatpush1.bf16.msra.mxu0 0
    %53 = vmatprep.subr.bf16.mxu0 0
    %54 = vmatpush1.bf16.msra.mxu0 0
    %55 = vmatprep.subr.bf16.mxu0 0
    %56 = vmatpush1.bf16.msra.mxu0 0
    %57 = vmatprep.subr.bf16.mxu0 0
    %58 = vmatpush1.bf16.msra.mxu0 0
    %59 = vmatprep.subr.bf16.mxu0 0
    %60 = vmatpush1.bf16.msra.mxu0 0
    %61 = vmatprep.subr.bf16.mxu0 0
    %62 = vmatpush1.bf16.msra.mxu0 0
    %63 = vmatprep.subr.bf16.mxu0 0
    %64 = vmatpush1.bf16.msra.mxu0 0
    %65 = vmatprep.subr.bf16.mxu0 0
    %66 = vmatpush1.bf16.msra.mxu0 %v46
    %67 = vmatprep.subr.bf16.mxu0 0
    %68 = vmatpush2.bf16.msra.mxu0 0
    %69 = vmatprep.subr.bf16.mxu0 0
    %70 = vmatpush2.bf16.msra.mxu0 0
    %71 = vmatprep.subr.bf16.mxu0 0
    %72 = vmatpush2.bf16.msra.mxu0 0
    %73 = vmatprep.subr.bf16.mxu0 0
    %74 = vmatpush2.bf16.msra.mxu0 0
    %75 = vmatprep.subr.bf16.mxu0 0
    %76 = vmatpush2.bf16.msra.mxu0 0
    %77 = vmatprep.subr.bf16.mxu0 0
    %78 = vmatpush2.bf16.msra.mxu0 0
    %79 = vmatprep.subr.bf16.mxu0 0
    %80 = vmatpush2.bf16.msra.mxu0 0
    %81 = vmatprep.subr.bf16.mxu0 0
    %82 = vmatpush2.bf16.msra.mxu0 0
    %83 = vmatprep.mubr.bf16.mxu0 0
    %84 = vmatmul.mubr.bf16.gmra.mxu0 %v49
    %v85 = vpop.f32.mrf.mxu0
    %v86 = vadd.f32 0.0, %v85
    %v87 = vpop.f32.mrf.mxu0
    %v88 = vpop.f32.mrf.mxu0
    %v89 = vadd.f32 0.0, %v88
    %v90 = vpop.f32.mrf.mxu0
    %91 = vdwg.mxu0
    %v92 = vpack.c.bf16 %v89, %v86
    %v94 = vunpack.c.l.b16 %v92
    %v95 = vunpack.c.h.b16 %v92
    %v96 = vpack.c.b16 %v94, %v94
    %v97 = vpack.c.b16 %v95, %v95
    %100 = vst [vmem:[#allocation7] sm:$0xf] %v96
    %101 = vst [vmem:[#allocation7 + $0x4] sm:$0xf] %v97
    // Predicated region
    $region18: #{tpu_custom_call.1} parent=1 // pred_check
      _
    $region19: #{tpu_custom_call.1} parent=1 // pred_check_branch
      %103 = sbr.rel (0) target = $region21
    $region20: #{tpu_custom_call.1} parent=1 // pred_region
      %s105 = ssub.s32 128, 128
      %106 = vsyncadd [#allocation4], %s105
      %s107 = sshll.u32 [#allocation7], 4
      %s108 = int_to_ptr.vmem [resolvable:$true] %s107
      %113 = dma.vmem_to_hbm [thread:$0]  %s108, 128, %s2, [#allocation4], 64, 64, 4
    $region21: #{tpu_custom_call.1} parent=1 // pred_fallthru
      _
    // Predicated region
    $region22: #{tpu_custom_call.1} parent=1 // pred_check
      _
    $region23: #{tpu_custom_call.1} parent=1 // pred_check_branch
      %115 = sbr.rel (0) target = $region25
    $region24: #{tpu_custom_call.1} parent=1 // pred_region
      %116 = dma.done [#allocation4], 128
    $region25: #{tpu_custom_call.1} parent=1 // pred_fallthru
      _
    %117 = vsyncpa [#allocation3], 1
    %118 = vsyncpa [#allocation6], 1
    %119 = vsyncpa [#allocation4], 1

</llo_original>
